<compile_context>
chip_gen: v5e
topology: v5e:2x2
jax: 0.10.0
libtpu: 0.0.40
codegen_flags: <defaults>
</compile_context>

<pallas_src>
import jax
import jax.numpy as jnp
from jax.experimental import pallas as pl
from jax.experimental.pallas import tpu as pltpu


def _round_up(n, m):
    return ((n + m - 1) // m) * m


def _autoencoder_kernel(x_ref, w_enc_ref, b_enc_ref, w_dec_ref, b_dec_ref, o_ref):
    # Native-dtype operands straight into the MXU; f32 accumulation.
    x = x_ref[...]
    w_enc = w_enc_ref[...]
    h = jnp.dot(x, w_enc, preferred_element_type=jnp.float32)

    # f32 epilogue: bias + ReLU.
    h = h + b_enc_ref[...].astype(jnp.float32)
    h = jnp.maximum(h, 0.0)

    # Decoder matmul: feed the MXU in the weight dtype (bf16 stays bf16), f32 accumulate.
    w_dec = w_dec_ref[...]
    y = jnp.dot(h.astype(w_dec.dtype), w_dec, preferred_element_type=jnp.float32)

    # f32 epilogue: bias + sigmoid (EUP), cast only at the store.
    y = y + b_dec_ref[...].astype(jnp.float32)
    y = jax.nn.sigmoid(y)
    o_ref[...] = y.astype(o_ref.dtype)


def _make_specs(tm, Dp, Hp, single_buffer_weights):
    const = lambda i: (0, 0)
    weight_kwargs = {}
    if single_buffer_weights and hasattr(pl, "Buffered"):
        # Constant index_map => never re-fetched; one buffer is enough (VMEM headroom
        # matters most under v7x's 64 MiB budget).
        weight_kwargs = dict(pipeline_mode=pl.Buffered(1))
    in_specs = [
        pl.BlockSpec((tm, Dp), lambda i: (i, 0)),            # x tile (streamed)
        pl.BlockSpec((Dp, Hp), const, **weight_kwargs),      # w_enc (resident)
        pl.BlockSpec((1, Hp), const),                        # b_enc (resident)
        pl.BlockSpec((Hp, Dp), const, **weight_kwargs),      # w_dec (resident)
        pl.BlockSpec((1, Dp), const),                        # b_dec (resident)
    ]
    out_specs = pl.BlockSpec((tm, Dp), lambda i: (i, 0))      # out tile (streamed)
    return in_specs, out_specs


def autoencoder_forward(x, w_enc, b_enc, w_dec, b_dec, *, block_rows=256):
    """x: [B, D]; w_enc: [D, H]; b_enc: [H]; w_dec: [H, D]; b_dec: [D] -> [B, D]."""
    B, D = x.shape
    H = w_enc.shape[1]

    # Lane-dense padding of feature dims to multiples of 128 (unmasked stores,
    # MXU-aligned tiles); batch tile aligned to the sublane packing of the dtype.
    Dp = _round_up(D, 128)
    Hp = _round_up(H, 128)
    row_align = 16 if x.dtype == jnp.bfloat16 else 8
    tm = max(row_align, min(block_rows, _round_up(B, row_align)))
    Bp = _round_up(B, tm)
    grid = (Bp // tm,)

    # Zero-pad.  Padded hidden cols: relu(0 + 0) == 0 -> no decoder contribution.
    # Padded output cols / batch rows are sliced off below.
    xp = jnp.zeros((Bp, Dp), x.dtype).at[:B, :D].set(x)
    w_enc_p = jnp.zeros((Dp, Hp), w_enc.dtype).at[:D, :H].set(w_enc)
    b_enc_p = jnp.zeros((1, Hp), b_enc.dtype).at[0, :H].set(b_enc)
    w_dec_p = jnp.zeros((Hp, Dp), w_dec.dtype).at[:H, :D].set(w_dec)
    b_dec_p = jnp.zeros((1, Dp), b_dec.dtype).at[0, :D].set(b_dec)

    # Explicit VMEM budget: resident weights (+ possible double buffer), streamed
    # double-buffered activation tiles, f32 intermediates, plus headroom.  Clamp to
    # [32 MiB, 64 MiB] so it is valid on v5e/v6e (128 MiB phys) and v7x (64 MiB phys).
    act_item = jnp.dtype(x.dtype).itemsize
    w_item = jnp.dtype(w_enc.dtype).itemsize
    resident = (2 * Dp * Hp + 2 * (Hp + Dp)) * w_item
    streamed = 2 * 2 * tm * Dp * act_item
    interm = 3 * 4 * tm * (Hp + Dp)
    vmem_limit = 2 * resident + streamed + interm + (4 << 20)
    vmem_limit = max(32 << 20, min(int(vmem_limit), 64 << 20))

    def run(single_buffer_weights):
        in_specs, out_specs = _make_specs(tm, Dp, Hp, single_buffer_weights)
        out = pl.pallas_call(
            _autoencoder_kernel,
            out_shape=jax.ShapeDtypeStruct((Bp, Dp), x.dtype),
            grid_spec=pl.GridSpec(grid=grid, in_specs=in_specs, out_specs=out_specs),
            compiler_params=pltpu.CompilerParams(
                dimension_semantics=("parallel",),   # batch axis -> megacore on v7x
                vmem_limit_bytes=vmem_limit),
        )(xp, w_enc_p, b_enc_p, w_dec_p, b_dec_p)
        return jax.block_until_ready(out)

    try:
        out_p = run(True)
    except Exception:
        # pl.Buffered(1) unsupported on this jax version -> default double buffering.
        out_p = run(False)

    return out_p[:B, :D]


def init_params(key, input_dim, hidden_dim, dtype=jnp.float32):
    """Deterministic init mimicking nn.Linear's U(-1/sqrt(fan_in), +1/sqrt(fan_in))."""
    k1, k2, k3, k4 = jax.random.split(key, 4)
    enc_bound = 1.0 / jnp.sqrt(input_dim)
    dec_bound = 1.0 / jnp.sqrt(hidden_dim)
    # Stored transposed relative to PyTorch's [out, in] so the kernel right-multiplies.
    w_enc = jax.random.uniform(k1, (input_dim, hidden_dim), dtype,
                               minval=-enc_bound, maxval=enc_bound)
    b_enc = jax.random.uniform(k2, (hidden_dim,), dtype,
                               minval=-enc_bound, maxval=enc_bound)
    w_dec = jax.random.uniform(k3, (hidden_dim, input_dim), dtype,
                               minval=-dec_bound, maxval=dec_bound)
    b_dec = jax.random.uniform(k4, (input_dim,), dtype,
                               minval=-dec_bound, maxval=dec_bound)
    return w_enc, b_enc, w_dec, b_dec


if __name__ == "__main__":
    input_dim = 64
    hidden_dim = 32
    batch = 8

    key = jax.random.PRNGKey(0)
    k_x, k_p = jax.random.split(key)
    x = jax.random.normal(k_x, (batch, input_dim), jnp.float32)
    w_enc, b_enc, w_dec, b_dec = init_params(k_p, input_dim, hidden_dim)

    out = autoencoder_forward(x, w_enc, b_enc, w_dec, b_dec)
    out = jax.block_until_ready(out)

    # Reference check in plain JAX (same math as the PyTorch forward).
    ref = jax.nn.sigmoid(jnp.maximum(x @ w_enc + b_enc, 0.0) @ w_dec + b_dec)
    assert out.shape == (batch, input_dim)
    assert jnp.allclose(out, ref, atol=1e-5, rtol=1e-5)

    print("KERNEL_OK")
</pallas_src>

<mosaic_0001>
module attributes {stable_mosaic.version = 11 : i64} {
  func.func @_autoencoder_kernel(%arg0: i32, %arg1: memref<8x128xf32, #tpu.memory_space<vmem>>, %arg2: memref<128x128xf32, #tpu.memory_space<vmem>>, %arg3: memref<1x128xf32, #tpu.memory_space<vmem>>, %arg4: memref<128x128xf32, #tpu.memory_space<vmem>>, %arg5: memref<1x128xf32, #tpu.memory_space<vmem>>, %arg6: memref<8x128xf32, #tpu.memory_space<vmem>>) attributes {dimension_semantics = [#tpu.dimension_semantics<parallel>], iteration_bounds = array<i64: 1>, scalar_prefetch = 0 : i64, scratch_operands = 0 : i64, tpu.core_type = #tpu.core_type<tc>, window_params = [{transform_indices = @transform_0, window_bounds = array<i64: 8, 128>}, {pipeline_mode = #tpu.pipeline_mode<synchronous>, transform_indices = @transform_1, window_bounds = array<i64: 128, 128>}, {pipeline_mode = #tpu.pipeline_mode<synchronous>, transform_indices = @transform_2, window_bounds = array<i64: 1, 128>}, {pipeline_mode = #tpu.pipeline_mode<synchronous>, transform_indices = @transform_3, window_bounds = array<i64: 128, 128>}, {pipeline_mode = #tpu.pipeline_mode<synchronous>, transform_indices = @transform_4, window_bounds = array<i64: 1, 128>}, {transform_indices = @transform_5, window_bounds = array<i64: 8, 128>}]} {
    %c0 = arith.constant 0 : index
    %c0_0 = arith.constant 0 : index
    %0 = vector.load %arg1[%c0, %c0_0] : memref<8x128xf32, #tpu.memory_space<vmem>>, vector<8x128xf32>
    %c0_1 = arith.constant 0 : index
    %c0_2 = arith.constant 0 : index
    %1 = vector.load %arg2[%c0_1, %c0_2] : memref<128x128xf32, #tpu.memory_space<vmem>>, vector<128x128xf32>
    %cst = arith.constant dense<0.000000e+00> : vector<8x128xf32>
    %2 = tpu.matmul %0, %1, %cst {dimension_numbers = #tpu.dot_dimension_numbers<[1], [0], [0], [1], [0, 0, 1, 1], [], []>} : vector<8x128xf32>, vector<128x128xf32>, vector<8x128xf32> -> vector<8x128xf32>
    %c0_3 = arith.constant 0 : index
    %c0_4 = arith.constant 0 : index
    %3 = vector.load %arg3[%c0_3, %c0_4] : memref<1x128xf32, #tpu.memory_space<vmem>>, vector<1x128xf32>
    %4 = vector.broadcast %3 : vector<1x128xf32> to vector<8x128xf32>
    %5 = arith.addf %2, %4 : vector<8x128xf32>
    %cst_5 = arith.constant 0.000000e+00 : f32
    %6 = vector.broadcast %cst_5 : f32 to vector<8x128xf32>
    %7 = arith.maximumf %5, %6 : vector<8x128xf32>
    %c0_6 = arith.constant 0 : index
    %c0_7 = arith.constant 0 : index
    %8 = vector.load %arg4[%c0_6, %c0_7] : memref<128x128xf32, #tpu.memory_space<vmem>>, vector<128x128xf32>
    %cst_8 = arith.constant dense<0.000000e+00> : vector<8x128xf32>
    %9 = tpu.matmul %7, %8, %cst_8 {dimension_numbers = #tpu.dot_dimension_numbers<[1], [0], [0], [1], [0, 0, 1, 1], [], []>} : vector<8x128xf32>, vector<128x128xf32>, vector<8x128xf32> -> vector<8x128xf32>
    %c0_9 = arith.constant 0 : index
    %c0_10 = arith.constant 0 : index
    %10 = vector.load %arg5[%c0_9, %c0_10] : memref<1x128xf32, #tpu.memory_space<vmem>>, vector<1x128xf32>
    %11 = vector.broadcast %10 : vector<1x128xf32> to vector<8x128xf32>
    %12 = arith.addf %9, %11 : vector<8x128xf32>
    %13 = arith.negf %12 : vector<8x128xf32>
    %14 = math.exp %13 : vector<8x128xf32>
    %cst_11 = arith.constant 1.000000e+00 : f32
    %15 = vector.broadcast %cst_11 : f32 to vector<8x128xf32>
    %16 = arith.addf %15, %14 : vector<8x128xf32>
    %17 = arith.divf %15, %16 : vector<8x128xf32>
    %c0_12 = arith.constant 0 : index
    %c0_13 = arith.constant 0 : index
    %18 = vector.load %arg6[%c0_12, %c0_13] : memref<8x128xf32, #tpu.memory_space<vmem>>, vector<8x128xf32>
    tpu.vector_store %arg6[%c0_12, %c0_13], %17 {strides = array<i32>} : memref<8x128xf32, #tpu.memory_space<vmem>>, vector<8x128xf32>,
    return
  }
  func.func @transform_0(%arg0: i32) -> (i32, i32) {
    %c0_i32 = arith.constant 0 : i32
    %c0_i32_0 = arith.constant 0 : i32
    return %arg0, %c0_i32 : i32, i32
  }
  func.func @transform_1(%arg0: i32) -> (i32, i32) {
    %c0_i32 = arith.constant 0 : i32
    %c0_i32_0 = arith.constant 0 : i32
    %c0_i32_1 = arith.constant 0 : i32
    return %c0_i32, %c0_i32_0 : i32, i32
  }
  func.func @transform_2(%arg0: i32) -> (i32, i32) {
    %c0_i32 = arith.constant 0 : i32
    %c0_i32_0 = arith.constant 0 : i32
    %c0_i32_1 = arith.constant 0 : i32
    return %c0_i32, %c0_i32_0 : i32, i32
  }
  func.func @transform_3(%arg0: i32) -> (i32, i32) {
    %c0_i32 = arith.constant 0 : i32
    %c0_i32_0 = arith.constant 0 : i32
    %c0_i32_1 = arith.constant 0 : i32
    return %c0_i32, %c0_i32_0 : i32, i32
  }
  func.func @transform_4(%arg0: i32) -> (i32, i32) {
    %c0_i32 = arith.constant 0 : i32
    %c0_i32_0 = arith.constant 0 : i32
    %c0_i32_1 = arith.constant 0 : i32
    return %c0_i32, %c0_i32_0 : i32, i32
  }
  func.func @transform_5(%arg0: i32) -> (i32, i32) {
    %c0_i32 = arith.constant 0 : i32
    %c0_i32_0 = arith.constant 0 : i32
    return %arg0, %c0_i32 : i32, i32
  }
}

module attributes {stable_mosaic.version = 11 : i64} {
  func.func @_autoencoder_kernel(%arg0: i32, %arg1: memref<8x128xf32, #tpu.memory_space<vmem>>, %arg2: memref<128x128xf32, #tpu.memory_space<vmem>>, %arg3: memref<1x128xf32, #tpu.memory_space<vmem>>, %arg4: memref<128x128xf32, #tpu.memory_space<vmem>>, %arg5: memref<1x128xf32, #tpu.memory_space<vmem>>, %arg6: memref<8x128xf32, #tpu.memory_space<vmem>>) attributes {dimension_semantics = [#tpu.dimension_semantics<parallel>], iteration_bounds = array<i64: 1>, scalar_prefetch = 0 : i64, scratch_operands = 0 : i64, tpu.core_type = #tpu.core_type<tc>, window_params = [{transform_indices = @transform_0, window_bounds = array<i64: 8, 128>}, {pipeline_mode = #tpu.pipeline_mode<synchronous>, transform_indices = @transform_1, window_bounds = array<i64: 128, 128>}, {pipeline_mode = #tpu.pipeline_mode<synchronous>, transform_indices = @transform_2, window_bounds = array<i64: 1, 128>}, {pipeline_mode = #tpu.pipeline_mode<synchronous>, transform_indices = @transform_3, window_bounds = array<i64: 128, 128>}, {pipeline_mode = #tpu.pipeline_mode<synchronous>, transform_indices = @transform_4, window_bounds = array<i64: 1, 128>}, {transform_indices = @transform_5, window_bounds = array<i64: 8, 128>}]} {
    %c0 = arith.constant 0 : index
    %c0_0 = arith.constant 0 : index
    %0 = vector.load %arg1[%c0, %c0_0] : memref<8x128xf32, #tpu.memory_space<vmem>>, vector<8x128xf32>
    %c0_1 = arith.constant 0 : index
    %c0_2 = arith.constant 0 : index
    %1 = vector.load %arg2[%c0_1, %c0_2] : memref<128x128xf32, #tpu.memory_space<vmem>>, vector<128x128xf32>
    %cst = arith.constant dense<0.000000e+00> : vector<8x128xf32>
    %2 = tpu.matmul %0, %1, %cst {dimension_numbers = #tpu.dot_dimension_numbers<[1], [0], [0], [1], [0, 0, 1, 1], [], []>} : vector<8x128xf32>, vector<128x128xf32>, vector<8x128xf32> -> vector<8x128xf32>
    %c0_3 = arith.constant 0 : index
    %c0_4 = arith.constant 0 : index
    %3 = vector.load %arg3[%c0_3, %c0_4] : memref<1x128xf32, #tpu.memory_space<vmem>>, vector<1x128xf32>
    %4 = vector.broadcast %3 : vector<1x128xf32> to vector<8x128xf32>
    %5 = arith.addf %2, %4 : vector<8x128xf32>
    %cst_5 = arith.constant 0.000000e+00 : f32
    %6 = vector.broadcast %cst_5 : f32 to vector<8x128xf32>
    %7 = arith.maximumf %5, %6 : vector<8x128xf32>
    %c0_6 = arith.constant 0 : index
    %c0_7 = arith.constant 0 : index
    %8 = vector.load %arg4[%c0_6, %c0_7] : memref<128x128xf32, #tpu.memory_space<vmem>>, vector<128x128xf32>
    %cst_8 = arith.constant dense<0.000000e+00> : vector<8x128xf32>
    %9 = tpu.matmul %7, %8, %cst_8 {dimension_numbers = #tpu.dot_dimension_numbers<[1], [0], [0], [1], [0, 0, 1, 1], [], []>} : vector<8x128xf32>, vector<128x128xf32>, vector<8x128xf32> -> vector<8x128xf32>
    %c0_9 = arith.constant 0 : index
    %c0_10 = arith.constant 0 : index
    %10 = vector.load %arg5[%c0_9, %c0_10] : memref<1x128xf32, #tpu.memory_space<vmem>>, vector<1x128xf32>
    %11 = vector.broadcast %10 : vector<1x128xf32> to vector<8x128xf32>
    %12 = arith.addf %9, %11 : vector<8x128xf32>
    %13 = arith.negf %12 : vector<8x128xf32>
    %14 = math.exp %13 : vector<8x128xf32>
    %cst_11 = arith.constant 1.000000e+00 : f32
    %15 = vector.broadcast %cst_11 : f32 to vector<8x128xf32>
    %16 = arith.addf %15, %14 : vector<8x128xf32>
    %17 = arith.divf %15, %16 : vector<8x128xf32>
    %c0_12 = arith.constant 0 : index
    %c0_13 = arith.constant 0 : index
    %18 = vector.load %arg6[%c0_12, %c0_13] : memref<8x128xf32, #tpu.memory_space<vmem>>, vector<8x128xf32>
    tpu.vector_store %arg6[%c0_12, %c0_13], %17 {strides = array<i32>} : memref<8x128xf32, #tpu.memory_space<vmem>>, vector<8x128xf32>,
    return
  }
  func.func @transform_0(%arg0: i32) -> (i32, i32) {
    %c0_i32 = arith.constant 0 : i32
    %c0_i32_0 = arith.constant 0 : i32
    return %arg0, %c0_i32 : i32, i32
  }
  func.func @transform_1(%arg0: i32) -> (i32, i32) {
    %c0_i32 = arith.constant 0 : i32
    %c0_i32_0 = arith.constant 0 : i32
    %c0_i32_1 = arith.constant 0 : i32
    return %c0_i32, %c0_i32_0 : i32, i32
  }
  func.func @transform_2(%arg0: i32) -> (i32, i32) {
    %c0_i32 = arith.constant 0 : i32
    %c0_i32_0 = arith.constant 0 : i32
    %c0_i32_1 = arith.constant 0 : i32
    return %c0_i32, %c0_i32_0 : i32, i32
  }
  func.func @transform_3(%arg0: i32) -> (i32, i32) {
    %c0_i32 = arith.constant 0 : i32
    %c0_i32_0 = arith.constant 0 : i32
    %c0_i32_1 = arith.constant 0 : i32
    return %c0_i32, %c0_i32_0 : i32, i32
  }
  func.func @transform_4(%arg0: i32) -> (i32, i32) {
    %c0_i32 = arith.constant 0 : i32
    %c0_i32_0 = arith.constant 0 : i32
    %c0_i32_1 = arith.constant 0 : i32
    return %c0_i32, %c0_i32_0 : i32, i32
  }
  func.func @transform_5(%arg0: i32) -> (i32, i32) {
    %c0_i32 = arith.constant 0 : i32
    %c0_i32_0 = arith.constant 0 : i32
    return %arg0, %c0_i32 : i32, i32
  }
}

</mosaic_0001>

<llo_original>
// kernel: tpu_custom_call.1
$region0: #{tpu_custom_call.1}
  #allocation0 [shape = 'u32[]', space=smem, size = 0x4, offset = 0x4, fixed_abs, tag = 'smem constant byte address 0x4 - core index']
  #allocation1 [shape = 'u32[72,128]{1,0:T(1,128)}', space=vmem, size = 0x9000, scoped, tag = 'internal scratch']
  %s0 = inlined_call_operand.hbm [shape: f32[8,128], index: 0, kind: input, shape index: {}]
  %s1 = inlined_call_operand.hbm [shape: f32[128,128], index: 1, kind: input, shape index: {}]
  %s2 = inlined_call_operand.vmem [shape: f32[1,128], index: 2, kind: input, shape index: {}]
  %s3 = inlined_call_operand.hbm [shape: f32[128,128], index: 3, kind: input, shape index: {}]
  %s4 = inlined_call_operand.vmem [shape: f32[1,128], index: 4, kind: input, shape index: {}]
  %s5 = inlined_call_operand.hbm [shape: f32[8,128], index: 5, kind: output, shape index: {}]
  %s6 = sld [smem:[#allocation0]]
  $region42: #{tpu_custom_call.1} parent=0
    _
  %s8 = ssub.s32 1, %s6
  %s9 = scalar_select 0, %s8, %s6
  $region1: #{tpu_custom_call.1} parent=0
    #allocation2 [shape = 'u8[4096]{0}', space=vmem, size = 0x1000, scoped, tag = 'input window, operand 0, single buffered']
    #allocation3 [shape = 's32[1]{0}', space=sflag, size = 0x4, scoped, tag = 'scoped memory for tpu_custom_call.1']
    #allocation4 [shape = 's32[1]{0}', space=sflag, size = 0x4, scoped, tag = 'scoped memory for tpu_custom_call.1']
    #allocation5 [shape = 'u8[65536]{0}', space=vmem, size = 0x10000, scoped, tag = 'input window, operand 1, single buffered']
    #allocation6 [shape = 's32[1]{0}', space=sflag, size = 0x4, scoped, tag = 'scoped memory for tpu_custom_call.1']
    #allocation7 [shape = 'u8[65536]{0}', space=vmem, size = 0x10000, scoped, tag = 'input window, operand 3, single buffered']
    #allocation8 [shape = 'u8[4096]{0}', space=vmem, size = 0x1000, scoped, tag = 'output window, operand 0, single buffered']
    %10 = vsyncpa [#allocation3], 0
    %11 = vsyncpa [#allocation6], 0
    %12 = vsyncpa [#allocation4], 0
    // Predicated region
    $region2: #{tpu_custom_call.1} parent=1 // pred_check
      _
    $region3: #{tpu_custom_call.1} parent=1 // pred_check_branch
      %14 = sbr.rel (0) target = $region5
    $region4: #{tpu_custom_call.1} parent=1 // pred_region
      %16 = vsyncadd [#allocation3], 0
      %s18 = sshll.u32 %s0, 4
      %s19 = int_to_ptr.hbm [resolvable:$true] %s18
      %s20 = sshll.u32 [#allocation2], 4
      %s21 = int_to_ptr.vmem [resolvable:$true] %s20
      %23 = dma.hbm_to_vmem [thread:$0]  %s19, 128, %s21, [#allocation3]
    $region5: #{tpu_custom_call.1} parent=1 // pred_fallthru
      _
    // Predicated region
    $region6: #{tpu_custom_call.1} parent=1 // pred_check
      _
    $region7: #{tpu_custom_call.1} parent=1 // pred_check_branch
      %25 = sbr.rel (0) target = $region9
    $region8: #{tpu_custom_call.1} parent=1 // pred_region
      %27 = vsyncadd [#allocation6], 0
      %s28 = sshll.u32 %s1, 4
      %s29 = int_to_ptr.hbm [resolvable:$true] %s28
      %s30 = sshll.u32 [#allocation5], 4
      %s31 = int_to_ptr.vmem [resolvable:$true] %s30
      %36 = dma.hbm_to_vmem [thread:$0]  %s29, 2048, %s31, [#allocation6], 128, 128, 8
    $region9: #{tpu_custom_call.1} parent=1 // pred_fallthru
      _
    // Predicated region
    $region10: #{tpu_custom_call.1} parent=1 // pred_check
      _
    $region11: #{tpu_custom_call.1} parent=1 // pred_check_branch
      %38 = sbr.rel (0) target = $region13
    $region12: #{tpu_custom_call.1} parent=1 // pred_region
      _
    $region13: #{tpu_custom_call.1} parent=1 // pred_fallthru
      _
    // Predicated region
    $region14: #{tpu_custom_call.1} parent=1 // pred_check
      _
    $region15: #{tpu_custom_call.1} parent=1 // pred_check_branch
      %40 = sbr.rel (0) target = $region17
    $region16: #{tpu_custom_call.1} parent=1 // pred_region
      %42 = vsyncadd [#allocation6], 0
      %s43 = sshll.u32 %s3, 4
      %s44 = int_to_ptr.hbm [resolvable:$true] %s43
      %s45 = sshll.u32 [#allocation7], 4
      %s46 = int_to_ptr.vmem [resolvable:$true] %s45
      %51 = dma.hbm_to_vmem [thread:$0]  %s44, 2048, %s46, [#allocation6], 128, 128, 8
    $region17: #{tpu_custom_call.1} parent=1 // pred_fallthru
      _
    // Predicated region
    $region18: #{tpu_custom_call.1} parent=1 // pred_check
      _
    $region19: #{tpu_custom_call.1} parent=1 // pred_check_branch
      %53 = sbr.rel (0) target = $region21
    $region20: #{tpu_custom_call.1} parent=1 // pred_region
      _
    $region21: #{tpu_custom_call.1} parent=1 // pred_fallthru
      _
    // Predicated region
    $region22: #{tpu_custom_call.1} parent=1 // pred_check
      _
    $region23: #{tpu_custom_call.1} parent=1 // pred_check_branch
      %55 = sbr.rel (0) target = $region25
    $region24: #{tpu_custom_call.1} parent=1 // pred_region
      %57 = dma.done [#allocation3], 128
    $region25: #{tpu_custom_call.1} parent=1 // pred_fallthru
      _
    // Predicated region
    $region26: #{tpu_custom_call.1} parent=1 // pred_check
      _
    $region27: #{tpu_custom_call.1} parent=1 // pred_check_branch
      %59 = sbr.rel (0) target = $region29
    $region28: #{tpu_custom_call.1} parent=1 // pred_region
      %61 = dma.done [#allocation6], 2048
    $region29: #{tpu_custom_call.1} parent=1 // pred_fallthru
      _
    // Predicated region
    $region30: #{tpu_custom_call.1} parent=1 // pred_check
      _
    $region31: #{tpu_custom_call.1} parent=1 // pred_check_branch
      %63 = sbr.rel (0) target = $region33
    $region32: #{tpu_custom_call.1} parent=1 // pred_region
      %65 = dma.done [#allocation6], 2048
    $region33: #{tpu_custom_call.1} parent=1 // pred_fallthru
      _
    %v66 = vld [vmem:[#allocation2] sm:$0xff]
    %v67 = vld [vmem:[#allocation5] sm:$0xff]
    %v68 = vld [vmem:[#allocation5 + $0x8] sm:$0xff]
    %v69 = vld [vmem:[#allocation5 + $0x10] sm:$0xff]
    %v70 = vld [vmem:[#allocation5 + $0x18] sm:$0xff]
    %v71 = vld [vmem:[#allocation5 + $0x20] sm:$0xff]
    %v72 = vld [vmem:[#allocation5 + $0x28] sm:$0xff]
    %v73 = vld [vmem:[#allocation5 + $0x30] sm:$0xff]
    %v74 = vld [vmem:[#allocation5 + $0x38] sm:$0xff]
    %v75 = vld [vmem:[#allocation5 + $0x40] sm:$0xff]
    %v76 = vld [vmem:[#allocation5 + $0x48] sm:$0xff]
    %v77 = vld [vmem:[#allocation5 + $0x50] sm:$0xff]
    %v78 = vld [vmem:[#allocation5 + $0x58] sm:$0xff]
    %v79 = vld [vmem:[#allocation5 + $0x60] sm:$0xff]
    %v80 = vld [vmem:[#allocation5 + $0x68] sm:$0xff]
    %v81 = vld [vmem:[#allocation5 + $0x70] sm:$0xff]
    %v82 = vld [vmem:[#allocation5 + $0x78] sm:$0xff]
    %v83 = vld [vmem:[%s2] sm:$0x1]
    %v85 = vperm.slane %v83, 0
    %87 = vmatpush.msra.mxu0 %v82
    %88 = vmatpush.msra.mxu0 %v81
    %89 = vmatpush.msra.mxu0 %v80
    %90 = vmatpush.msra.mxu0 %v79
    %91 = vmatpush.msra.mxu0 %v78
    %92 = vmatpush.msra.mxu0 %v77
    %93 = vmatpush.msra.mxu0 %v76
    %94 = vmatpush.msra.mxu0 %v75
    %95 = vmatpush.msra.mxu0 %v74
    %96 = vmatpush.msra.mxu0 %v73
    %97 = vmatpush.msra.mxu0 %v72
    %98 = vmatpush.msra.mxu0 %v71
    %99 = vmatpush.msra.mxu0 %v70
    %100 = vmatpush.msra.mxu0 %v69
    %101 = vmatpush.msra.mxu0 %v68
    %102 = vmatpush.msra.mxu0 %v67
    %103 = vmatmul.f32.gmra.mxu0 %v66
    %v104 = vpop.f32.mrf.mxu0
    %v105 = vadd.f32 %v85, %v104
    %106 = vdwg.mxu0
    %v107 = vmax.f32 %v105, 0.0
    %v108 = vld [vmem:[#allocation7] sm:$0xff]
    %v109 = vld [vmem:[#allocation7 + $0x8] sm:$0xff]
    %v110 = vld [vmem:[#allocation7 + $0x10] sm:$0xff]
    %v111 = vld [vmem:[#allocation7 + $0x18] sm:$0xff]
    %v112 = vld [vmem:[#allocation7 + $0x20] sm:$0xff]
    %v113 = vld [vmem:[#allocation7 + $0x28] sm:$0xff]
    %v114 = vld [vmem:[#allocation7 + $0x30] sm:$0xff]
    %v115 = vld [vmem:[#allocation7 + $0x38] sm:$0xff]
    %v116 = vld [vmem:[#allocation7 + $0x40] sm:$0xff]
    %v117 = vld [vmem:[#allocation7 + $0x48] sm:$0xff]
    %v118 = vld [vmem:[#allocation7 + $0x50] sm:$0xff]
    %v119 = vld [vmem:[#allocation7 + $0x58] sm:$0xff]
    %v120 = vld [vmem:[#allocation7 + $0x60] sm:$0xff]
    %v121 = vld [vmem:[#allocation7 + $0x68] sm:$0xff]
    %v122 = vld [vmem:[#allocation7 + $0x70] sm:$0xff]
    %v123 = vld [vmem:[#allocation7 + $0x78] sm:$0xff]
    %v124 = vld [vmem:[%s4] sm:$0x1]
    %v126 = vperm.slane %v124, 0
    %128 = vmatpush.msra.mxu0 %v123
    %129 = vmatpush.msra.mxu0 %v122
    %130 = vmatpush.msra.mxu0 %v121
    %131 = vmatpush.msra.mxu0 %v120
    %132 = vmatpush.msra.mxu0 %v119
    %133 = vmatpush.msra.mxu0 %v118
    %134 = vmatpush.msra.mxu0 %v117
    %135 = vmatpush.msra.mxu0 %v116
    %136 = vmatpush.msra.mxu0 %v115
    %137 = vmatpush.msra.mxu0 %v114
    %138 = vmatpush.msra.mxu0 %v113
    %139 = vmatpush.msra.mxu0 %v112
    %140 = vmatpush.msra.mxu0 %v111
    %141 = vmatpush.msra.mxu0 %v110
    %142 = vmatpush.msra.mxu0 %v109
    %143 = vmatpush.msra.mxu0 %v108
    %144 = vmatmul.f32.gmra.mxu0 %v107
    %v145 = vpop.f32.mrf.mxu0
    %v146 = vadd.f32 %v126, %v145
    %147 = vdwg.mxu0
    %v148 = vxor.u32 %v146, 2147483648
    %v149 = vmul.f32 %v148, 1.442695
    %v150 = vpow.pop %v149
    %v151 = vadd.f32 %v150, 1.0
    %v152 = vrcp.pop %v151
    %v153 = vmul.f32 %v151, %v152
    %v154 = vsub.f32 1.0, %v153
    %v155 = vmul.f32 %v152, %v154
    %v156 = vadd.f32 %v152, %v155
    %vm157 = vweird.f32 %v151
    %vm158 = vweird.f32 %v152
    %vm159 = vmor %vm157, %vm158
    %v160 = vsel %vm159, %v152, %v156
    %v161 = vand.u32 2147483647, %v151
    %vm162 = vcmp.eq.f32.partialorder %v161, 8.507059e+37
    %v163 = vand.u32 %v151, 2147483648
    %v164 = vor.u32 1.1754944e-38, %v163
    %v165 = vsel %vm162, %v164, %v160
    %v166 = vmul.f32 1.0, %v165
    %167 = vst [vmem:[#allocation8] sm:$0xff] %v166
    // Predicated region
    $region34: #{tpu_custom_call.1} parent=1 // pred_check
      _
    $region35: #{tpu_custom_call.1} parent=1 // pred_check_branch
      %169 = sbr.rel (0) target = $region37
    $region36: #{tpu_custom_call.1} parent=1 // pred_region
      %171 = vsyncadd [#allocation4], 0
      %s173 = sshll.u32 [#allocation8], 4
      %s174 = int_to_ptr.vmem [resolvable:$true] %s173
      %s175 = sshll.u32 %s5, 4
      %s176 = int_to_ptr.hbm [resolvable:$true] %s175
      %178 = dma.vmem_to_hbm [thread:$0]  %s174, 128, %s176, [#allocation4]
    $region37: #{tpu_custom_call.1} parent=1 // pred_fallthru
      _
    // Predicated region
    $region38: #{tpu_custom_call.1} parent=1 // pred_check
      _
    $region39: #{tpu_custom_call.1} parent=1 // pred_check_branch
      %180 = sbr.rel (0) target = $region41
    $region40: #{tpu_custom_call.1} parent=1 // pred_region
      %182 = dma.done [#allocation4], 128
    $region41: #{tpu_custom_call.1} parent=1 // pred_fallthru
      _
    %183 = vsyncpa [#allocation3], 1
    %184 = vsyncpa [#allocation6], 1
    %185 = vsyncpa [#allocation4], 1

// kernel: tpu_custom_call.1
$region0: #{tpu_custom_call.1}
  #allocation0 [shape = 'u32[]', space=smem, size = 0x4, offset = 0x4, fixed_abs, tag = 'smem constant byte address 0x4 - core index']
  #allocation1 [shape = 'u32[72,128]{1,0:T(1,128)}', space=vmem, size = 0x9000, scoped, tag = 'internal scratch']
  %s0 = inlined_call_operand.hbm [shape: f32[8,128], index: 0, kind: input, shape index: {}]
  %s1 = inlined_call_operand.hbm [shape: f32[128,128], index: 1, kind: input, shape index: {}]
  %s2 = inlined_call_operand.vmem [shape: f32[1,128], index: 2, kind: input, shape index: {}]
  %s3 = inlined_call_operand.hbm [shape: f32[128,128], index: 3, kind: input, shape index: {}]
  %s4 = inlined_call_operand.vmem [shape: f32[1,128], index: 4, kind: input, shape index: {}]
  %s5 = inlined_call_operand.hbm [shape: f32[8,128], index: 5, kind: output, shape index: {}]
  %s6 = sld [smem:[#allocation0]]
  $region42: #{tpu_custom_call.1} parent=0
    _
  %s8 = ssub.s32 1, %s6
  %s9 = scalar_select 0, %s8, %s6
  $region1: #{tpu_custom_call.1} parent=0
    #allocation2 [shape = 'u8[4096]{0}', space=vmem, size = 0x1000, scoped, tag = 'input window, operand 0, single buffered']
    #allocation3 [shape = 's32[1]{0}', space=sflag, size = 0x4, scoped, tag = 'scoped memory for tpu_custom_call.1']
    #allocation4 [shape = 's32[1]{0}', space=sflag, size = 0x4, scoped, tag = 'scoped memory for tpu_custom_call.1']
    #allocation5 [shape = 'u8[65536]{0}', space=vmem, size = 0x10000, scoped, tag = 'input window, operand 1, single buffered']
    #allocation6 [shape = 's32[1]{0}', space=sflag, size = 0x4, scoped, tag = 'scoped memory for tpu_custom_call.1']
    #allocation7 [shape = 'u8[65536]{0}', space=vmem, size = 0x10000, scoped, tag = 'input window, operand 3, single buffered']
    #allocation8 [shape = 'u8[4096]{0}', space=vmem, size = 0x1000, scoped, tag = 'output window, operand 0, single buffered']
    %10 = vsyncpa [#allocation3], 0
    %11 = vsyncpa [#allocation6], 0
    %12 = vsyncpa [#allocation4], 0
    // Predicated region
    $region2: #{tpu_custom_call.1} parent=1 // pred_check
      _
    $region3: #{tpu_custom_call.1} parent=1 // pred_check_branch
      %14 = sbr.rel (0) target = $region5
    $region4: #{tpu_custom_call.1} parent=1 // pred_region
      %16 = vsyncadd [#allocation3], 0
      %s18 = sshll.u32 %s0, 4
      %s19 = int_to_ptr.hbm [resolvable:$true] %s18
      %s20 = sshll.u32 [#allocation2], 4
      %s21 = int_to_ptr.vmem [resolvable:$true] %s20
      %23 = dma.hbm_to_vmem [thread:$0]  %s19, 128, %s21, [#allocation3]
    $region5: #{tpu_custom_call.1} parent=1 // pred_fallthru
      _
    // Predicated region
    $region6: #{tpu_custom_call.1} parent=1 // pred_check
      _
    $region7: #{tpu_custom_call.1} parent=1 // pred_check_branch
      %25 = sbr.rel (0) target = $region9
    $region8: #{tpu_custom_call.1} parent=1 // pred_region
      %27 = vsyncadd [#allocation6], 0
      %s28 = sshll.u32 %s1, 4
      %s29 = int_to_ptr.hbm [resolvable:$true] %s28
      %s30 = sshll.u32 [#allocation5], 4
      %s31 = int_to_ptr.vmem [resolvable:$true] %s30
      %36 = dma.hbm_to_vmem [thread:$0]  %s29, 2048, %s31, [#allocation6], 128, 128, 8
    $region9: #{tpu_custom_call.1} parent=1 // pred_fallthru
      _
    // Predicated region
    $region10: #{tpu_custom_call.1} parent=1 // pred_check
      _
    $region11: #{tpu_custom_call.1} parent=1 // pred_check_branch
      %38 = sbr.rel (0) target = $region13
    $region12: #{tpu_custom_call.1} parent=1 // pred_region
      _
    $region13: #{tpu_custom_call.1} parent=1 // pred_fallthru
      _
    // Predicated region
    $region14: #{tpu_custom_call.1} parent=1 // pred_check
      _
    $region15: #{tpu_custom_call.1} parent=1 // pred_check_branch
      %40 = sbr.rel (0) target = $region17
    $region16: #{tpu_custom_call.1} parent=1 // pred_region
      %42 = vsyncadd [#allocation6], 0
      %s43 = sshll.u32 %s3, 4
      %s44 = int_to_ptr.hbm [resolvable:$true] %s43
      %s45 = sshll.u32 [#allocation7], 4
      %s46 = int_to_ptr.vmem [resolvable:$true] %s45
      %51 = dma.hbm_to_vmem [thread:$0]  %s44, 2048, %s46, [#allocation6], 128, 128, 8
    $region17: #{tpu_custom_call.1} parent=1 // pred_fallthru
      _
    // Predicated region
    $region18: #{tpu_custom_call.1} parent=1 // pred_check
      _
    $region19: #{tpu_custom_call.1} parent=1 // pred_check_branch
      %53 = sbr.rel (0) target = $region21
    $region20: #{tpu_custom_call.1} parent=1 // pred_region
      _
    $region21: #{tpu_custom_call.1} parent=1 // pred_fallthru
      _
    // Predicated region
    $region22: #{tpu_custom_call.1} parent=1 // pred_check
      _
    $region23: #{tpu_custom_call.1} parent=1 // pred_check_branch
      %55 = sbr.rel (0) target = $region25
    $region24: #{tpu_custom_call.1} parent=1 // pred_region
      %57 = dma.done [#allocation3], 128
    $region25: #{tpu_custom_call.1} parent=1 // pred_fallthru
      _
    // Predicated region
    $region26: #{tpu_custom_call.1} parent=1 // pred_check
      _
    $region27: #{tpu_custom_call.1} parent=1 // pred_check_branch
      %59 = sbr.rel (0) target = $region29
    $region28: #{tpu_custom_call.1} parent=1 // pred_region
      %61 = dma.done [#allocation6], 2048
    $region29: #{tpu_custom_call.1} parent=1 // pred_fallthru
      _
    // Predicated region
    $region30: #{tpu_custom_call.1} parent=1 // pred_check
      _
    $region31: #{tpu_custom_call.1} parent=1 // pred_check_branch
      %63 = sbr.rel (0) target = $region33
    $region32: #{tpu_custom_call.1} parent=1 // pred_region
      %65 = dma.done [#allocation6], 2048
    $region33: #{tpu_custom_call.1} parent=1 // pred_fallthru
      _
    %v66 = vld [vmem:[#allocation2] sm:$0xff]
    %v67 = vld [vmem:[#allocation5] sm:$0xff]
    %v68 = vld [vmem:[#allocation5 + $0x8] sm:$0xff]
    %v69 = vld [vmem:[#allocation5 + $0x10] sm:$0xff]
    %v70 = vld [vmem:[#allocation5 + $0x18] sm:$0xff]
    %v71 = vld [vmem:[#allocation5 + $0x20] sm:$0xff]
    %v72 = vld [vmem:[#allocation5 + $0x28] sm:$0xff]
    %v73 = vld [vmem:[#allocation5 + $0x30] sm:$0xff]
    %v74 = vld [vmem:[#allocation5 + $0x38] sm:$0xff]
    %v75 = vld [vmem:[#allocation5 + $0x40] sm:$0xff]
    %v76 = vld [vmem:[#allocation5 + $0x48] sm:$0xff]
    %v77 = vld [vmem:[#allocation5 + $0x50] sm:$0xff]
    %v78 = vld [vmem:[#allocation5 + $0x58] sm:$0xff]
    %v79 = vld [vmem:[#allocation5 + $0x60] sm:$0xff]
    %v80 = vld [vmem:[#allocation5 + $0x68] sm:$0xff]
    %v81 = vld [vmem:[#allocation5 + $0x70] sm:$0xff]
    %v82 = vld [vmem:[#allocation5 + $0x78] sm:$0xff]
    %v83 = vld [vmem:[%s2] sm:$0x1]
    %v85 = vperm.slane %v83, 0
    %87 = vmatpush.msra.mxu0 %v82
    %88 = vmatpush.msra.mxu0 %v81
    %89 = vmatpush.msra.mxu0 %v80
    %90 = vmatpush.msra.mxu0 %v79
    %91 = vmatpush.msra.mxu0 %v78
    %92 = vmatpush.msra.mxu0 %v77
    %93 = vmatpush.msra.mxu0 %v76
    %94 = vmatpush.msra.mxu0 %v75
    %95 = vmatpush.msra.mxu0 %v74
    %96 = vmatpush.msra.mxu0 %v73
    %97 = vmatpush.msra.mxu0 %v72
    %98 = vmatpush.msra.mxu0 %v71
    %99 = vmatpush.msra.mxu0 %v70
    %100 = vmatpush.msra.mxu0 %v69
    %101 = vmatpush.msra.mxu0 %v68
    %102 = vmatpush.msra.mxu0 %v67
    %103 = vmatmul.f32.gmra.mxu0 %v66
    %v104 = vpop.f32.mrf.mxu0
    %v105 = vadd.f32 %v85, %v104
    %106 = vdwg.mxu0
    %v107 = vmax.f32 %v105, 0.0
    %v108 = vld [vmem:[#allocation7] sm:$0xff]
    %v109 = vld [vmem:[#allocation7 + $0x8] sm:$0xff]
    %v110 = vld [vmem:[#allocation7 + $0x10] sm:$0xff]
    %v111 = vld [vmem:[#allocation7 + $0x18] sm:$0xff]
    %v112 = vld [vmem:[#allocation7 + $0x20] sm:$0xff]
    %v113 = vld [vmem:[#allocation7 + $0x28] sm:$0xff]
    %v114 = vld [vmem:[#allocation7 + $0x30] sm:$0xff]
    %v115 = vld [vmem:[#allocation7 + $0x38] sm:$0xff]
    %v116 = vld [vmem:[#allocation7 + $0x40] sm:$0xff]
    %v117 = vld [vmem:[#allocation7 + $0x48] sm:$0xff]
    %v118 = vld [vmem:[#allocation7 + $0x50] sm:$0xff]
    %v119 = vld [vmem:[#allocation7 + $0x58] sm:$0xff]
    %v120 = vld [vmem:[#allocation7 + $0x60] sm:$0xff]
    %v121 = vld [vmem:[#allocation7 + $0x68] sm:$0xff]
    %v122 = vld [vmem:[#allocation7 + $0x70] sm:$0xff]
    %v123 = vld [vmem:[#allocation7 + $0x78] sm:$0xff]
    %v124 = vld [vmem:[%s4] sm:$0x1]
    %v126 = vperm.slane %v124, 0
    %128 = vmatpush.msra.mxu0 %v123
    %129 = vmatpush.msra.mxu0 %v122
    %130 = vmatpush.msra.mxu0 %v121
    %131 = vmatpush.msra.mxu0 %v120
    %132 = vmatpush.msra.mxu0 %v119
    %133 = vmatpush.msra.mxu0 %v118
    %134 = vmatpush.msra.mxu0 %v117
    %135 = vmatpush.msra.mxu0 %v116
    %136 = vmatpush.msra.mxu0 %v115
    %137 = vmatpush.msra.mxu0 %v114
    %138 = vmatpush.msra.mxu0 %v113
    %139 = vmatpush.msra.mxu0 %v112
    %140 = vmatpush.msra.mxu0 %v111
    %141 = vmatpush.msra.mxu0 %v110
    %142 = vmatpush.msra.mxu0 %v109
    %143 = vmatpush.msra.mxu0 %v108
    %144 = vmatmul.f32.gmra.mxu0 %v107
    %v145 = vpop.f32.mrf.mxu0
    %v146 = vadd.f32 %v126, %v145
    %147 = vdwg.mxu0
    %v148 = vxor.u32 %v146, 2147483648
    %v149 = vmul.f32 %v148, 1.442695
    %v150 = vpow.pop %v149
    %v151 = vadd.f32 %v150, 1.0
    %v152 = vrcp.pop %v151
    %v153 = vmul.f32 %v151, %v152
    %v154 = vsub.f32 1.0, %v153
    %v155 = vmul.f32 %v152, %v154
    %v156 = vadd.f32 %v152, %v155
    %vm157 = vweird.f32 %v151
    %vm158 = vweird.f32 %v152
    %vm159 = vmor %vm157, %vm158
    %v160 = vsel %vm159, %v152, %v156
    %v161 = vand.u32 2147483647, %v151
    %vm162 = vcmp.eq.f32.partialorder %v161, 8.507059e+37
    %v163 = vand.u32 %v151, 2147483648
    %v164 = vor.u32 1.1754944e-38, %v163
    %v165 = vsel %vm162, %v164, %v160
    %v166 = vmul.f32 1.0, %v165
    %167 = vst [vmem:[#allocation8] sm:$0xff] %v166
    // Predicated region
    $region34: #{tpu_custom_call.1} parent=1 // pred_check
      _
    $region35: #{tpu_custom_call.1} parent=1 // pred_check_branch
      %169 = sbr.rel (0) target = $region37
    $region36: #{tpu_custom_call.1} parent=1 // pred_region
      %171 = vsyncadd [#allocation4], 0
      %s173 = sshll.u32 [#allocation8], 4
      %s174 = int_to_ptr.vmem [resolvable:$true] %s173
      %s175 = sshll.u32 %s5, 4
      %s176 = int_to_ptr.hbm [resolvable:$true] %s175
      %178 = dma.vmem_to_hbm [thread:$0]  %s174, 128, %s176, [#allocation4]
    $region37: #{tpu_custom_call.1} parent=1 // pred_fallthru
      _
    // Predicated region
    $region38: #{tpu_custom_call.1} parent=1 // pred_check
      _
    $region39: #{tpu_custom_call.1} parent=1 // pred_check_branch
      %180 = sbr.rel (0) target = $region41
    $region40: #{tpu_custom_call.1} parent=1 // pred_region
      %182 = dma.done [#allocation4], 128
    $region41: #{tpu_custom_call.1} parent=1 // pred_fallthru
      _
    %183 = vsyncpa [#allocation3], 1
    %184 = vsyncpa [#allocation6], 1
    %185 = vsyncpa [#allocation4], 1

</llo_original>
